<compile_context>
chip_gen: v7x
topology: tpu7x:2x2x1
jax: 0.10.0
libtpu: 0.0.40
codegen_flags: <defaults>
</compile_context>

<pallas_src>
import jax
import jax.numpy as jnp
from jax.experimental import pallas as pl
from jax.experimental.pallas import tpu as pltpu


# ----------------------------------------------------------------------------
# helpers
# ----------------------------------------------------------------------------
def _round_up(x, m):
    return ((x + m - 1) // m) * m


def _cdiv(a, b):
    return -(-a // b)


def _bias_offsets(K):
    """Lane-aligned (multiple-of-128) segment starts inside one packed bias
    buffer so every in-kernel slice starts on a lane boundary."""
    segs = [("t1", 32), ("ab1", 64), ("t2", K), ("ab2", 2 * K),
            ("p1", 512), ("p2", 256), ("p3", 1)]
    offs, cur = {}, 0
    for name, ln in segs:
        offs[name] = (cur, ln)
        cur = _round_up(cur + ln, 128)
    offs["total"] = cur
    return offs


def _block_diag(*ms):
    rows = sum(m.shape[0] for m in ms)
    cols = sum(m.shape[1] for m in ms)
    out = jnp.zeros((rows, cols), jnp.float32)
    r = c = 0
    for m in ms:
        out = out.at[r:r + m.shape[0], c:c + m.shape[1]].set(m)
        r += m.shape[0]
        c += m.shape[1]
    return out


# ----------------------------------------------------------------------------
# kernel
# ----------------------------------------------------------------------------
def _make_kernel(K, offs):
    OT1, LT1 = offs["t1"]
    OAB1, LAB1 = offs["ab1"]
    OT2, LT2 = offs["t2"]
    OAB2, LAB2 = offs["ab2"]
    OP1, LP1 = offs["p1"]
    OP2, LP2 = offs["p2"]
    OP3, LP3 = offs["p3"]

    def _sig(x):
        # 1/(1+exp(-x)); approx reciprocal runs on the otherwise-idle EUP slot.
        return pl.reciprocal(1.0 + jnp.exp(-x), approx=True)

    def kernel(stu_ref, ek_ref, wt1_ref, wt2_ref, wab1_ref, wab2_ref,
               p1_ref, p2_ref, p3_ref, bias_ref, out_ref):
        f32 = jnp.float32
        bf16 = jnp.bfloat16

        # ---- theta head: K -> 32 -> K (dropout = identity at inference) ----
        ht = jnp.maximum(
            jnp.dot(stu_ref[...], wt1_ref[...], preferred_element_type=f32)
            + bias_ref[:, pl.ds(OT1, LT1)], 0.0)                   # [tB, 32]
        stat = _sig(jnp.dot(ht, wt2_ref[...], preferred_element_type=f32)
                    + bias_ref[:, pl.ds(OT2, LT2)])                # [tB, K]

        # ---- a & b heads fused (block-diagonal, a-column replicated K) -----
        hab = jnp.maximum(
            jnp.dot(ek_ref[...], wab1_ref[...], preferred_element_type=f32)
            + bias_ref[:, pl.ds(OAB1, LAB1)], 0.0)                 # [tB, 64]
        yab = _sig(jnp.dot(hab, wab2_ref[...], preferred_element_type=f32)
                   + bias_ref[:, pl.ds(OAB2, LAB2)])               # [tB, 2K]

        e_diff = yab[:, 0:K]            # a-head output, already K lanes wide
        k_diff = yab[:, K:2 * K]        # b-head output
        z = (e_diff * (stat - k_diff)).astype(bf16)                # [tB, K]

        # ---- PosLinear stack: |W| precomputed, bf16 MXU, f32 accumulate ----
        z1 = _sig(jnp.dot(z, p1_ref[...], preferred_element_type=f32)
                  + bias_ref[:, pl.ds(OP1, LP1)])                  # [tB, 512]
        z2 = _sig(jnp.dot(z1.astype(bf16), p2_ref[...],
                          preferred_element_type=f32)
                  + bias_ref[:, pl.ds(OP2, LP2)])                  # [tB, 256]
        o = (jnp.dot(z2.astype(bf16), p3_ref[...],
                     preferred_element_type=f32)
             + bias_ref[:, pl.ds(OP3, LP3)])                       # [tB, 1]
        # Final sigmoid: exact reciprocal (tiny tensor, closer torch parity).
        out_ref[...] = 1.0 / (1.0 + jnp.exp(-o))

    return kernel


# ----------------------------------------------------------------------------
# parameter init (torch-equivalent layouts) + one-time packing
# ----------------------------------------------------------------------------
def _xavier_normal(key, out_f, in_f):
    std = (2.0 / (in_f + out_f)) ** 0.5
    return std * jax.random.normal(key, (out_f, in_f), jnp.float32)


def _bias_init(key, out_f, in_f):
    bound = 1.0 / (in_f ** 0.5)
    return jax.random.uniform(key, (out_f,), jnp.float32, -bound, bound)


def init_params(key, knowledge_n, exer_n, word_n, student_n):
    K = knowledge_n
    keys = iter(jax.random.split(key, 32))
    p = {}
    p["student_emb"] = _xavier_normal(next(keys), student_n, K)
    p["k_difficulty"] = _xavier_normal(next(keys), word_n, K)    # unused in fwd
    p["e_difficulty"] = _xavier_normal(next(keys), word_n, K)    # unused in fwd
    p["k_difficulty_i"] = _xavier_normal(next(keys), exer_n, K)
    p["e_difficulty_i"] = _xavier_normal(next(keys), exer_n, K)

    def linear(name, in_f, out_f):
        p[name + "_w"] = _xavier_normal(next(keys), out_f, in_f)  # [out, in]
        p[name + "_b"] = _bias_init(next(keys), out_f, in_f)      # [out]

    linear("t1", K, 32); linear("t2", 32, K)      # theta
    linear("a1", K, 32); linear("a2", 32, 1)      # a
    linear("b1", K, 32); linear("b2", 32, K)      # b
    linear("p1", K, 512)                          # PosLinear1
    linear("p2", 512, 256)                        # PosLinear2
    linear("p3", 256, 1)                          # PosLinear3
    return p


def pack_params(p, K):
    """One-time preprocessing (outside the per-call path)."""
    def wT(name):
        return jnp.transpose(p[name + "_w"]).astype(jnp.float32)  # [in, out]

    wt1 = wT("t1")                                    # [K, 32]
    wt2 = wT("t2")                                    # [32, K]
    wab1 = _block_diag(wT("a1"), wT("b1"))            # [2K, 64]
    a2_rep = jnp.tile(wT("a2"), (1, K))               # [32, K] replicated column
    wab2 = _block_diag(a2_rep, wT("b2"))              # [64, 2K]

    # PosLinear: 2*relu(-W)+W == |W|; stored bf16 for the MXU fast path.
    p1_abs = jnp.abs(wT("p1")).astype(jnp.bfloat16)   # [K, 512]
    p2_abs = jnp.abs(wT("p2")).astype(jnp.bfloat16)   # [512, 256]
    p3_abs = jnp.abs(wT("p3")).astype(jnp.bfloat16)   # [256, 1]

    offs = _bias_offsets(K)
    bias = jnp.zeros((1, offs["total"]), jnp.float32)

    def put(buf, seg, vec):
        o, ln = offs[seg]
        return buf.at[0, o:o + ln].set(vec)

    bias = put(bias, "t1", p["t1_b"])
    bias = put(bias, "ab1", jnp.concatenate([p["a1_b"], p["b1_b"]]))
    bias = put(bias, "t2", p["t2_b"])
    bias = put(bias, "ab2", jnp.concatenate([jnp.tile(p["a2_b"], K), p["b2_b"]]))
    bias = put(bias, "p1", p["p1_b"])
    bias = put(bias, "p2", p["p2_b"])
    bias = put(bias, "p3", p["p3_b"])

    # One gather instead of two at call time: pre-concat the two tables that
    # are indexed with the same exercise id.
    ek_table = jnp.concatenate([p["e_difficulty_i"], p["k_difficulty_i"]], axis=1)

    return {"student_emb": p["student_emb"], "ek_table": ek_table,
            "wt1": wt1, "wt2": wt2, "wab1": wab1, "wab2": wab2,
            "p1_abs": p1_abs, "p2_abs": p2_abs, "p3_abs": p3_abs,
            "bias": bias}


# ----------------------------------------------------------------------------
# forward
# ----------------------------------------------------------------------------
def _choose_tile(B, max_tile=2048, split_threshold=512):
    """Derive the batch tile from B: one step for small batches, otherwise an
    even number of steps (>=2, so v7x's two TensorCores both get work) with
    the tile capped at max_tile; padding waste bounded by sublane alignment."""
    Bp8 = _round_up(max(B, 1), 8)
    if Bp8 <= split_threshold:
        return Bp8
    n_steps = max(2, _cdiv(Bp8, max_tile))
    if n_steps % 2:
        n_steps += 1
    return _round_up(_cdiv(Bp8, n_steps), 8)


def net_mdirt_forward(kp, stu_id, input_exercise, inut_word, inut_format,
                      inut_section, inut_wordlen, inut_cefr,
                      input_knowledge_point):
    del inut_word, inut_format, inut_section, inut_wordlen, inut_cefr
    del input_knowledge_point  # unused in the returned value of the reference

    # --- glue: embedding gathers (data-dependent; stays in plain JAX).
    #     No concatenate / xcat round trip anymore.
    stu_emb = kp["student_emb"][stu_id]                 # [B, K]
    ek_emb = kp["ek_table"][input_exercise]             # [B, 2K] = [e | k]

    B = stu_emb.shape[0]
    K = kp["wt1"].shape[0]
    tB = _choose_tile(B)
    Bp = _round_up(B, tB)
    if Bp != B:
        stu_emb = jnp.pad(stu_emb, ((0, Bp - B), (0, 0)))
        ek_emb = jnp.pad(ek_emb, ((0, Bp - B), (0, 0)))

    offs = _bias_offsets(K)
    kernel = _make_kernel(K, offs)

    def const2d(arr):
        return pl.BlockSpec(arr.shape, lambda i: (0, 0))   # VMEM-resident

    out = pl.pallas_call(
        kernel,
        out_shape=jax.ShapeDtypeStruct((Bp, 1), jnp.float32),
        grid=(Bp // tB,),
        in_specs=[
            pl.BlockSpec((tB, K), lambda i: (i, 0)),        # student emb tile
            pl.BlockSpec((tB, 2 * K), lambda i: (i, 0)),    # e|k emb tile
            const2d(kp["wt1"]), const2d(kp["wt2"]),
            const2d(kp["wab1"]), const2d(kp["wab2"]),
            const2d(kp["p1_abs"]), const2d(kp["p2_abs"]), const2d(kp["p3_abs"]),
            const2d(kp["bias"]),
        ],
        out_specs=pl.BlockSpec((tB, 1), lambda i: (i, 0)),
        compiler_params=pltpu.CompilerParams(
            dimension_semantics=("parallel",),
            vmem_limit_bytes=32 * 1024 * 1024),
    )(stu_emb, ek_emb, kp["wt1"], kp["wt2"], kp["wab1"], kp["wab2"],
      kp["p1_abs"], kp["p2_abs"], kp["p3_abs"], kp["bias"])

    return out[:B, 0]


# ----------------------------------------------------------------------------
# pure-JAX reference (for a correctness sanity check)
# ----------------------------------------------------------------------------
def reference_forward(p, stu_id, input_exercise):
    hi = jax.lax.Precision.HIGHEST
    sig = jax.nn.sigmoid

    def lin(x, name):
        return jnp.matmul(x, p[name + "_w"].T, precision=hi) + p[name + "_b"]

    def mlp(x, n1, n2):
        return lin(jnp.maximum(lin(x, n1), 0.0), n2)

    def poslin(x, name):
        return jnp.matmul(x, jnp.abs(p[name + "_w"]).T, precision=hi) + p[name + "_b"]

    stu = p["student_emb"][stu_id]
    e = p["e_difficulty_i"][input_exercise]
    k = p["k_difficulty_i"][input_exercise]
    stat = sig(mlp(stu, "t1", "t2"))
    ed = sig(mlp(e, "a1", "a2"))
    kd = sig(mlp(k, "b1", "b2"))
    x = ed * (stat - kd)
    x = sig(poslin(x, "p1"))
    x = sig(poslin(x, "p2"))
    return sig(poslin(x, "p3")).reshape(-1)


# ----------------------------------------------------------------------------
if __name__ == "__main__":
    knowledge_n, exer_n, word_n, student_n = 16, 20, 30, 12

    raw = init_params(jax.random.PRNGKey(0), knowledge_n, exer_n, word_n, student_n)
    kparams = pack_params(raw, knowledge_n)       # one-time preprocessing

    def make_inputs(key, B):
        ks = jax.random.split(key, 8)
        return dict(
            stu_id=jax.random.randint(ks[0], (B,), 0, student_n),
            input_exercise=jax.random.randint(ks[1], (B,), 0, exer_n),
            inut_word=jax.random.randint(ks[2], (B,), 0, word_n),
            inut_format=jax.random.randint(ks[3], (B,), 0, 5),
            inut_section=jax.random.randint(ks[4], (B,), 1, 20),
            inut_wordlen=jax.random.randint(ks[5], (B,), 1, 10),
            inut_cefr=jax.random.randint(ks[6], (B,), 0, 6),
            input_knowledge_point=jax.random.randint(
                ks[7], (B, knowledge_n), 0, 2).astype(jnp.float32),
        )

    ok = True
    # Small-batch check (single grid step) and a larger one that exercises the
    # multi-step grid + padding path.
    for seed, B in ((0, 8), (1, 777)):
        inp = make_inputs(jax.random.PRNGKey(seed), B)
        out = net_mdirt_forward(kparams, **inp)
        out = jax.block_until_ready(out)
        assert out.shape == (B,)
        assert bool(jnp.all(jnp.isfinite(out)))
        ref = reference_forward(raw, inp["stu_id"], inp["input_exercise"])
        ok = ok and bool(jnp.all(jnp.abs(out - ref) < 2e-2))
        assert ok, (B, out[:4], ref[:4])

    print("KERNEL_OK")
</pallas_src>

<mosaic_0001>
module attributes {stable_mosaic.version = 11 : i64} {
  func.func @kernel(%arg0: i32, %arg1: memref<8x16xf32, #tpu.memory_space<vmem>>, %arg2: memref<8x32xf32, #tpu.memory_space<vmem>>, %arg3: memref<16x32xf32, #tpu.memory_space<vmem>>, %arg4: memref<32x16xf32, #tpu.memory_space<vmem>>, %arg5: memref<32x64xf32, #tpu.memory_space<vmem>>, %arg6: memref<64x32xf32, #tpu.memory_space<vmem>>, %arg7: memref<16x512xbf16, #tpu.memory_space<vmem>>, %arg8: memref<512x256xbf16, #tpu.memory_space<vmem>>, %arg9: memref<256x1xbf16, #tpu.memory_space<vmem>>, %arg10: memref<1x1408xf32, #tpu.memory_space<vmem>>, %arg11: memref<8x1xf32, #tpu.memory_space<vmem>>) attributes {dimension_semantics = [#tpu.dimension_semantics<parallel>], iteration_bounds = array<i64: 1>, scalar_prefetch = 0 : i64, scratch_operands = 0 : i64, tpu.core_type = #tpu.core_type<tc>, window_params = [{transform_indices = @transform_0, window_bounds = array<i64: 8, 16>}, {transform_indices = @transform_1, window_bounds = array<i64: 8, 32>}, {pipeline_mode = #tpu.pipeline_mode<synchronous>, transform_indices = @transform_2, window_bounds = array<i64: 16, 32>}, {pipeline_mode = #tpu.pipeline_mode<synchronous>, transform_indices = @transform_3, window_bounds = array<i64: 32, 16>}, {pipeline_mode = #tpu.pipeline_mode<synchronous>, transform_indices = @transform_4, window_bounds = array<i64: 32, 64>}, {pipeline_mode = #tpu.pipeline_mode<synchronous>, transform_indices = @transform_5, window_bounds = array<i64: 64, 32>}, {pipeline_mode = #tpu.pipeline_mode<synchronous>, transform_indices = @transform_6, window_bounds = array<i64: 16, 512>}, {pipeline_mode = #tpu.pipeline_mode<synchronous>, transform_indices = @transform_7, window_bounds = array<i64: 512, 256>}, {pipeline_mode = #tpu.pipeline_mode<synchronous>, transform_indices = @transform_8, window_bounds = array<i64: 256, 1>}, {pipeline_mode = #tpu.pipeline_mode<synchronous>, transform_indices = @transform_9, window_bounds = array<i64: 1, 1408>}, {transform_indices = @transform_10, window_bounds = array<i64: 8, 1>}]} {
    %c0 = arith.constant 0 : index
    %c0_0 = arith.constant 0 : index
    %0 = vector.load %arg1[%c0, %c0_0] : memref<8x16xf32, #tpu.memory_space<vmem>>, vector<8x16xf32>
    %c0_1 = arith.constant 0 : index
    %c0_2 = arith.constant 0 : index
    %1 = vector.load %arg3[%c0_1, %c0_2] : memref<16x32xf32, #tpu.memory_space<vmem>>, vector<16x32xf32>
    %cst = arith.constant dense<0.000000e+00> : vector<8x32xf32>
    %2 = tpu.matmul %0, %1, %cst {dimension_numbers = #tpu.dot_dimension_numbers<[1], [0], [0], [1], [0, 0, 1, 1], [], []>} : vector<8x16xf32>, vector<16x32xf32>, vector<8x32xf32> -> vector<8x32xf32>
    %c0_3 = arith.constant 0 : index
    %c0_4 = arith.constant 0 : index
    %3 = vector.load %arg10[%c0_3, %c0_4] : memref<1x1408xf32, #tpu.memory_space<vmem>>, vector<1x32xf32>
    %4 = vector.broadcast %3 : vector<1x32xf32> to vector<8x32xf32>
    %5 = arith.addf %2, %4 : vector<8x32xf32>
    %cst_5 = arith.constant 0.000000e+00 : f32
    %6 = vector.broadcast %cst_5 : f32 to vector<8x32xf32>
    %7 = arith.maximumf %5, %6 : vector<8x32xf32>
    %c0_6 = arith.constant 0 : index
    %c0_7 = arith.constant 0 : index
    %8 = vector.load %arg4[%c0_6, %c0_7] : memref<32x16xf32, #tpu.memory_space<vmem>>, vector<32x16xf32>
    %cst_8 = arith.constant dense<0.000000e+00> : vector<8x16xf32>
    %9 = tpu.matmul %7, %8, %cst_8 {dimension_numbers = #tpu.dot_dimension_numbers<[1], [0], [0], [1], [0, 0, 1, 1], [], []>} : vector<8x32xf32>, vector<32x16xf32>, vector<8x16xf32> -> vector<8x16xf32>
    %c0_9 = arith.constant 0 : index
    %c256 = arith.constant 256 : index
    %10 = vector.load %arg10[%c0_9, %c256] : memref<1x1408xf32, #tpu.memory_space<vmem>>, vector<1x16xf32>
    %11 = vector.broadcast %10 : vector<1x16xf32> to vector<8x16xf32>
    %12 = arith.addf %9, %11 : vector<8x16xf32>
    %cst_10 = arith.constant 0.000000e+00 : f32
    %13 = vector.broadcast %cst_10 : f32 to vector<8x16xf32>
    %14 = arith.subf %13, %12 : vector<8x16xf32>
    %15 = math.exp %14 : vector<8x16xf32>
    %cst_11 = arith.constant 1.000000e+00 : f32
    %16 = vector.broadcast %cst_11 : f32 to vector<8x16xf32>
    %17 = arith.addf %16, %15 : vector<8x16xf32>
    %18 = tpu.reciprocal %17 {approx = true} : vector<8x16xf32> -> vector<8x16xf32>
    %c0_12 = arith.constant 0 : index
    %c0_13 = arith.constant 0 : index
    %19 = vector.load %arg2[%c0_12, %c0_13] : memref<8x32xf32, #tpu.memory_space<vmem>>, vector<8x32xf32>
    %c0_14 = arith.constant 0 : index
    %c0_15 = arith.constant 0 : index
    %20 = vector.load %arg5[%c0_14, %c0_15] : memref<32x64xf32, #tpu.memory_space<vmem>>, vector<32x64xf32>
    %cst_16 = arith.constant dense<0.000000e+00> : vector<8x64xf32>
    %21 = tpu.matmul %19, %20, %cst_16 {dimension_numbers = #tpu.dot_dimension_numbers<[1], [0], [0], [1], [0, 0, 1, 1], [], []>} : vector<8x32xf32>, vector<32x64xf32>, vector<8x64xf32> -> vector<8x64xf32>
    %c0_17 = arith.constant 0 : index
    %c128 = arith.constant 128 : index
    %22 = vector.load %arg10[%c0_17, %c128] : memref<1x1408xf32, #tpu.memory_space<vmem>>, vector<1x64xf32>
    %23 = vector.broadcast %22 : vector<1x64xf32> to vector<8x64xf32>
    %24 = arith.addf %21, %23 : vector<8x64xf32>
    %cst_18 = arith.constant 0.000000e+00 : f32
    %25 = vector.broadcast %cst_18 : f32 to vector<8x64xf32>
    %26 = arith.maximumf %24, %25 : vector<8x64xf32>
    %c0_19 = arith.constant 0 : index
    %c0_20 = arith.constant 0 : index
    %27 = vector.load %arg6[%c0_19, %c0_20] : memref<64x32xf32, #tpu.memory_space<vmem>>, vector<64x32xf32>
    %cst_21 = arith.constant dense<0.000000e+00> : vector<8x32xf32>
    %28 = tpu.matmul %26, %27, %cst_21 {dimension_numbers = #tpu.dot_dimension_numbers<[1], [0], [0], [1], [0, 0, 1, 1], [], []>} : vector<8x64xf32>, vector<64x32xf32>, vector<8x32xf32> -> vector<8x32xf32>
    %c0_22 = arith.constant 0 : index
    %c384 = arith.constant 384 : index
    %29 = vector.load %arg10[%c0_22, %c384] : memref<1x1408xf32, #tpu.memory_space<vmem>>, vector<1x32xf32>
    %30 = vector.broadcast %29 : vector<1x32xf32> to vector<8x32xf32>
    %31 = arith.addf %28, %30 : vector<8x32xf32>
    %cst_23 = arith.constant 0.000000e+00 : f32
    %32 = vector.broadcast %cst_23 : f32 to vector<8x32xf32>
    %33 = arith.subf %32, %31 : vector<8x32xf32>
    %34 = math.exp %33 : vector<8x32xf32>
    %cst_24 = arith.constant 1.000000e+00 : f32
    %35 = vector.broadcast %cst_24 : f32 to vector<8x32xf32>
    %36 = arith.addf %35, %34 : vector<8x32xf32>
    %37 = tpu.reciprocal %36 {approx = true} : vector<8x32xf32> -> vector<8x32xf32>
    %38 = vector.extract_strided_slice %37 {offsets = [0, 0], sizes = [8, 16], strides = [1, 1]} : vector<8x32xf32> to vector<8x16xf32>
    %39 = vector.extract_strided_slice %37 {offsets = [0, 16], sizes = [8, 16], strides = [1, 1]} : vector<8x32xf32> to vector<8x16xf32>
    %40 = arith.subf %18, %39 : vector<8x16xf32>
    %41 = arith.mulf %38, %40 : vector<8x16xf32>
    %42 = arith.truncf %41 : vector<8x16xf32> to vector<8x16xbf16>
    %c0_25 = arith.constant 0 : index
    %c0_26 = arith.constant 0 : index
    %43 = vector.load %arg7[%c0_25, %c0_26] : memref<16x512xbf16, #tpu.memory_space<vmem>>, vector<16x512xbf16>
    %cst_27 = arith.constant dense<0.000000e+00> : vector<8x512xf32>
    %44 = tpu.matmul %42, %43, %cst_27 {dimension_numbers = #tpu.dot_dimension_numbers<[1], [0], [0], [1], [0, 0, 1, 1], [], []>} : vector<8x16xbf16>, vector<16x512xbf16>, vector<8x512xf32> -> vector<8x512xf32>
    %c0_28 = arith.constant 0 : index
    %c512 = arith.constant 512 : index
    %45 = vector.load %arg10[%c0_28, %c512] : memref<1x1408xf32, #tpu.memory_space<vmem>>, vector<1x512xf32>
    %46 = vector.broadcast %45 : vector<1x512xf32> to vector<8x512xf32>
    %47 = arith.addf %44, %46 : vector<8x512xf32>
    %cst_29 = arith.constant 0.000000e+00 : f32
    %48 = vector.broadcast %cst_29 : f32 to vector<8x512xf32>
    %49 = arith.subf %48, %47 : vector<8x512xf32>
    %50 = math.exp %49 : vector<8x512xf32>
    %cst_30 = arith.constant 1.000000e+00 : f32
    %51 = vector.broadcast %cst_30 : f32 to vector<8x512xf32>
    %52 = arith.addf %51, %50 : vector<8x512xf32>
    %53 = tpu.reciprocal %52 {approx = true} : vector<8x512xf32> -> vector<8x512xf32>
    %54 = arith.truncf %53 : vector<8x512xf32> to vector<8x512xbf16>
    %c0_31 = arith.constant 0 : index
    %c0_32 = arith.constant 0 : index
    %55 = vector.load %arg8[%c0_31, %c0_32] : memref<512x256xbf16, #tpu.memory_space<vmem>>, vector<512x256xbf16>
    %cst_33 = arith.constant dense<0.000000e+00> : vector<8x256xf32>
    %56 = tpu.matmul %54, %55, %cst_33 {dimension_numbers = #tpu.dot_dimension_numbers<[1], [0], [0], [1], [0, 0, 1, 1], [], []>} : vector<8x512xbf16>, vector<512x256xbf16>, vector<8x256xf32> -> vector<8x256xf32>
    %c0_34 = arith.constant 0 : index
    %c1024 = arith.constant 1024 : index
    %57 = vector.load %arg10[%c0_34, %c1024] : memref<1x1408xf32, #tpu.memory_space<vmem>>, vector<1x256xf32>
    %58 = vector.broadcast %57 : vector<1x256xf32> to vector<8x256xf32>
    %59 = arith.addf %56, %58 : vector<8x256xf32>
    %cst_35 = arith.constant 0.000000e+00 : f32
    %60 = vector.broadcast %cst_35 : f32 to vector<8x256xf32>
    %61 = arith.subf %60, %59 : vector<8x256xf32>
    %62 = math.exp %61 : vector<8x256xf32>
    %cst_36 = arith.constant 1.000000e+00 : f32
    %63 = vector.broadcast %cst_36 : f32 to vector<8x256xf32>
    %64 = arith.addf %63, %62 : vector<8x256xf32>
    %65 = tpu.reciprocal %64 {approx = true} : vector<8x256xf32> -> vector<8x256xf32>
    %66 = arith.truncf %65 : vector<8x256xf32> to vector<8x256xbf16>
    %c0_37 = arith.constant 0 : index
    %c0_38 = arith.constant 0 : index
    %67 = vector.load %arg9[%c0_37, %c0_38] : memref<256x1xbf16, #tpu.memory_space<vmem>>, vector<256x1xbf16>
    %cst_39 = arith.constant dense<0.000000e+00> : vector<8x1xf32>
    %68 = tpu.matmul %66, %67, %cst_39 {dimension_numbers = #tpu.dot_dimension_numbers<[1], [0], [0], [1], [0, 0, 1, 1], [], []>} : vector<8x256xbf16>, vector<256x1xbf16>, vector<8x1xf32> -> vector<8x1xf32>
    %c0_40 = arith.constant 0 : index
    %c1280 = arith.constant 1280 : index
    %69 = vector.load %arg10[%c0_40, %c1280] : memref<1x1408xf32, #tpu.memory_space<vmem>>, vector<1x1xf32>
    %70 = vector.broadcast %69 : vector<1x1xf32> to vector<8x1xf32>
    %71 = arith.addf %68, %70 : vector<8x1xf32>
    %cst_41 = arith.constant 0.000000e+00 : f32
    %72 = vector.broadcast %cst_41 : f32 to vector<8x1xf32>
    %73 = arith.subf %72, %71 : vector<8x1xf32>
    %74 = math.exp %73 : vector<8x1xf32>
    %cst_42 = arith.constant 1.000000e+00 : f32
    %75 = vector.broadcast %cst_42 : f32 to vector<8x1xf32>
    %76 = arith.addf %75, %74 : vector<8x1xf32>
    %cst_43 = arith.constant 1.000000e+00 : f32
    %77 = vector.broadcast %cst_43 : f32 to vector<8x1xf32>
    %78 = arith.divf %77, %76 : vector<8x1xf32>
    %c0_44 = arith.constant 0 : index
    %c0_45 = arith.constant 0 : index
    %79 = vector.load %arg11[%c0_44, %c0_45] : memref<8x1xf32, #tpu.memory_space<vmem>>, vector<8x1xf32>
    tpu.vector_store %arg11[%c0_44, %c0_45], %78 {strides = array<i32>} : memref<8x1xf32, #tpu.memory_space<vmem>>, vector<8x1xf32>,
    return
  }
  func.func @transform_0(%arg0: i32) -> (i32, i32) {
    %c0_i32 = arith.constant 0 : i32
    %c0_i32_0 = arith.constant 0 : i32
    return %arg0, %c0_i32 : i32, i32
  }
  func.func @transform_1(%arg0: i32) -> (i32, i32) {
    %c0_i32 = arith.constant 0 : i32
    %c0_i32_0 = arith.constant 0 : i32
    return %arg0, %c0_i32 : i32, i32
  }
  func.func @transform_2(%arg0: i32) -> (i32, i32) {
    %c0_i32 = arith.constant 0 : i32
    %c0_i32_0 = arith.constant 0 : i32
    %c0_i32_1 = arith.constant 0 : i32
    return %c0_i32, %c0_i32_0 : i32, i32
  }
  func.func @transform_3(%arg0: i32) -> (i32, i32) {
    %c0_i32 = arith.constant 0 : i32
    %c0_i32_0 = arith.constant 0 : i32
    %c0_i32_1 = arith.constant 0 : i32
    return %c0_i32, %c0_i32_0 : i32, i32
  }
  func.func @transform_4(%arg0: i32) -> (i32, i32) {
    %c0_i32 = arith.constant 0 : i32
    %c0_i32_0 = arith.constant 0 : i32
    %c0_i32_1 = arith.constant 0 : i32
    return %c0_i32, %c0_i32_0 : i32, i32
  }
  func.func @transform_5(%arg0: i32) -> (i32, i32) {
    %c0_i32 = arith.constant 0 : i32
    %c0_i32_0 = arith.constant 0 : i32
    %c0_i32_1 = arith.constant 0 : i32
    return %c0_i32, %c0_i32_0 : i32, i32
  }
  func.func @transform_6(%arg0: i32) -> (i32, i32) {
    %c0_i32 = arith.constant 0 : i32
    %c0_i32_0 = arith.constant 0 : i32
    %c0_i32_1 = arith.constant 0 : i32
    return %c0_i32, %c0_i32_0 : i32, i32
  }
  func.func @transform_7(%arg0: i32) -> (i32, i32) {
    %c0_i32 = arith.constant 0 : i32
    %c0_i32_0 = arith.constant 0 : i32
    %c0_i32_1 = arith.constant 0 : i32
    return %c0_i32, %c0_i32_0 : i32, i32
  }
  func.func @transform_8(%arg0: i32) -> (i32, i32) {
    %c0_i32 = arith.constant 0 : i32
    %c0_i32_0 = arith.constant 0 : i32
    %c0_i32_1 = arith.constant 0 : i32
    return %c0_i32, %c0_i32_0 : i32, i32
  }
  func.func @transform_9(%arg0: i32) -> (i32, i32) {
    %c0_i32 = arith.constant 0 : i32
    %c0_i32_0 = arith.constant 0 : i32
    %c0_i32_1 = arith.constant 0 : i32
    return %c0_i32, %c0_i32_0 : i32, i32
  }
  func.func @transform_10(%arg0: i32) -> (i32, i32) {
    %c0_i32 = arith.constant 0 : i32
    %c0_i32_0 = arith.constant 0 : i32
    return %arg0, %c0_i32 : i32, i32
  }
}

</mosaic_0001>

<llo_original>
// kernel: tpu_custom_call.1
$region0: #{tpu_custom_call.1}
  #allocation0 [shape = 'u32[]', space=smem, size = 0x4, offset = 0x4, fixed_abs, tag = 'smem constant byte address 0x4 - core index']
  #allocation1 [shape = 'u32[144,128]{1,0:T(1,128)}', space=vmem, size = 0x12000, scoped, tag = 'internal scratch']
  %s0 = inlined_call_operand.vmem [shape: f32[8,16], index: 0, kind: input, shape index: {}]
  %s1 = inlined_call_operand.vmem [shape: f32[8,32], index: 1, kind: input, shape index: {}]
  %s2 = inlined_call_operand.vmem [shape: f32[16,32], index: 2, kind: input, shape index: {}]
  %s3 = inlined_call_operand.vmem [shape: f32[32,16], index: 3, kind: input, shape index: {}]
  %s4 = inlined_call_operand.vmem [shape: f32[32,64], index: 4, kind: input, shape index: {}]
  %s5 = inlined_call_operand.vmem [shape: f32[64,32], index: 5, kind: input, shape index: {}]
  %s6 = inlined_call_operand.vmem [shape: bf16[16,512], index: 6, kind: input, shape index: {}]
  %s7 = inlined_call_operand.hbm [shape: bf16[512,256], index: 7, kind: input, shape index: {}]
  %s8 = inlined_call_operand.vmem [shape: bf16[256,1], index: 8, kind: input, shape index: {}]
  %s9 = inlined_call_operand.vmem [shape: f32[1,1408], index: 9, kind: input, shape index: {}]
  %s10 = inlined_call_operand.vmem [shape: f32[8,1], index: 10, kind: output, shape index: {}]
  %s11 = sld [smem:[#allocation0]]
  $region54: #{tpu_custom_call.1} parent=0
    _
  %s13 = ssub.s32 1, %s11
  %s14 = scalar_select 0, %s13, %s11
  $region1: #{tpu_custom_call.1} parent=0
    #allocation2 [shape = 'u8[262144]{0}', space=vmem, size = 0x40000, scoped, tag = 'input window, operand 7, single buffered']
    #allocation3 [shape = 's32[1]{0}', space=sflag, size = 0x4, scoped, tag = 'scoped memory for tpu_custom_call.1']
    %15 = vsyncpa [#allocation3], 0
    // Predicated region
    $region2: #{tpu_custom_call.1} parent=1 // pred_check
      _
    $region3: #{tpu_custom_call.1} parent=1 // pred_check_branch
      %17 = sbr.rel (0) target = $region5
    $region4: #{tpu_custom_call.1} parent=1 // pred_region
      _
    $region5: #{tpu_custom_call.1} parent=1 // pred_fallthru
      _
    // Predicated region
    $region6: #{tpu_custom_call.1} parent=1 // pred_check
      _
    $region7: #{tpu_custom_call.1} parent=1 // pred_check_branch
      %19 = sbr.rel (0) target = $region9
    $region8: #{tpu_custom_call.1} parent=1 // pred_region
      _
    $region9: #{tpu_custom_call.1} parent=1 // pred_fallthru
      _
    // Predicated region
    $region10: #{tpu_custom_call.1} parent=1 // pred_check
      _
    $region11: #{tpu_custom_call.1} parent=1 // pred_check_branch
      %21 = sbr.rel (0) target = $region13
    $region12: #{tpu_custom_call.1} parent=1 // pred_region
      _
    $region13: #{tpu_custom_call.1} parent=1 // pred_fallthru
      _
    // Predicated region
    $region14: #{tpu_custom_call.1} parent=1 // pred_check
      _
    $region15: #{tpu_custom_call.1} parent=1 // pred_check_branch
      %23 = sbr.rel (0) target = $region17
    $region16: #{tpu_custom_call.1} parent=1 // pred_region
      _
    $region17: #{tpu_custom_call.1} parent=1 // pred_fallthru
      _
    // Predicated region
    $region18: #{tpu_custom_call.1} parent=1 // pred_check
      _
    $region19: #{tpu_custom_call.1} parent=1 // pred_check_branch
      %25 = sbr.rel (0) target = $region21
    $region20: #{tpu_custom_call.1} parent=1 // pred_region
      _
    $region21: #{tpu_custom_call.1} parent=1 // pred_fallthru
      _
    // Predicated region
    $region22: #{tpu_custom_call.1} parent=1 // pred_check
      _
    $region23: #{tpu_custom_call.1} parent=1 // pred_check_branch
      %27 = sbr.rel (0) target = $region25
    $region24: #{tpu_custom_call.1} parent=1 // pred_region
      _
    $region25: #{tpu_custom_call.1} parent=1 // pred_fallthru
      _
    // Predicated region
    $region26: #{tpu_custom_call.1} parent=1 // pred_check
      _
    $region27: #{tpu_custom_call.1} parent=1 // pred_check_branch
      %29 = sbr.rel (0) target = $region29
    $region28: #{tpu_custom_call.1} parent=1 // pred_region
      _
    $region29: #{tpu_custom_call.1} parent=1 // pred_fallthru
      _
    // Predicated region
    $region30: #{tpu_custom_call.1} parent=1 // pred_check
      _
    $region31: #{tpu_custom_call.1} parent=1 // pred_check_branch
      %31 = sbr.rel (0) target = $region33
    $region32: #{tpu_custom_call.1} parent=1 // pred_region
      %s33 = ssub.s32 8192, 8192
      %34 = vsyncadd [#allocation3], %s33
      %s35 = sshll.u32 [#allocation2], 4
      %s36 = int_to_ptr.vmem [resolvable:$true] %s35
      %41 = dma.hbm_to_vmem [thread:$0]  %s7, 8192, %s36, [#allocation3], 128, 128, 8
    $region33: #{tpu_custom_call.1} parent=1 // pred_fallthru
      _
    // Predicated region
    $region34: #{tpu_custom_call.1} parent=1 // pred_check
      _
    $region35: #{tpu_custom_call.1} parent=1 // pred_check_branch
      %43 = sbr.rel (0) target = $region37
    $region36: #{tpu_custom_call.1} parent=1 // pred_region
      _
    $region37: #{tpu_custom_call.1} parent=1 // pred_fallthru
      _
    // Predicated region
    $region38: #{tpu_custom_call.1} parent=1 // pred_check
      _
    $region39: #{tpu_custom_call.1} parent=1 // pred_check_branch
      %45 = sbr.rel (0) target = $region41
    $region40: #{tpu_custom_call.1} parent=1 // pred_region
      _
    $region41: #{tpu_custom_call.1} parent=1 // pred_fallthru
      _
    // Predicated region
    $region42: #{tpu_custom_call.1} parent=1 // pred_check
      _
    $region43: #{tpu_custom_call.1} parent=1 // pred_check_branch
      %47 = sbr.rel (0) target = $region45
    $region44: #{tpu_custom_call.1} parent=1 // pred_region
      %48 = dma.done [#allocation3], 8192
    $region45: #{tpu_custom_call.1} parent=1 // pred_fallthru
      _
    %v50 = vld [vmem:[%s0] sm:$0xff]
    %v51 = vld [vmem:[%s2] sm:$0xff]
    %v52 = vld [vmem:[%s2 + $0x8] sm:$0xff]
    %v53 = vld [vmem:[%s9] sm:$0x1]
    %v55 = vlaneseq
    %v56 = vshrl.u32 %v55, 7
    %v57 = vsub.s32 0, %v56
    %v58 = vrot.slane %v53, %v57
    %vm60 = vcmask 130048
    %v62 = vsel %vm60, %v50, 0
    %64 = vmatprep.subr.mxu0 0.0
    %65 = vmatpush1.msra.mxu0 %v51
    %66 = vmatprep.subr.mxu0 0.0
    %67 = vmatpush1.msra.mxu0 %v52
    %68 = vmatprep.subr.mxu0 0.0
    %69 = vmatpush1.msra.mxu0 0.0
    %70 = vmatprep.subr.mxu0 0.0
    %71 = vmatpush1.msra.mxu0 0.0
    %72 = vmatprep.subr.mxu0 0.0
    %73 = vmatpush1.msra.mxu0 0.0
    %74 = vmatprep.subr.mxu0 0.0
    %75 = vmatpush1.msra.mxu0 0.0
    %76 = vmatprep.subr.mxu0 0.0
    %77 = vmatpush1.msra.mxu0 0.0
    %78 = vmatprep.subr.mxu0 0.0
    %79 = vmatpush1.msra.mxu0 0.0
    %80 = vmatprep.subr.mxu0 0.0
    %81 = vmatpush1.msra.mxu0 0.0
    %82 = vmatprep.subr.mxu0 0.0
    %83 = vmatpush1.msra.mxu0 0.0
    %84 = vmatprep.subr.mxu0 0.0
    %85 = vmatpush1.msra.mxu0 0.0
    %86 = vmatprep.subr.mxu0 0.0
    %87 = vmatpush1.msra.mxu0 0.0
    %88 = vmatprep.subr.mxu0 0.0
    %89 = vmatpush1.msra.mxu0 0.0
    %90 = vmatprep.subr.mxu0 0.0
    %91 = vmatpush1.msra.mxu0 0.0
    %92 = vmatprep.subr.mxu0 0.0
    %93 = vmatpush1.msra.mxu0 0.0
    %94 = vmatprep.subr.mxu0 0.0
    %95 = vmatpush1.msra.mxu0 0.0
    %96 = vmatprep.subr.mxu0 0.0
    %97 = vmatpush1.msra.mxu0 0.0
    %98 = vmatprep.subr.mxu0 0.0
    %99 = vmatpush1.msra.mxu0 0.0
    %100 = vmatprep.subr.mxu0 0.0
    %101 = vmatpush1.msra.mxu0 0.0
    %102 = vmatprep.subr.mxu0 0.0
    %103 = vmatpush1.msra.mxu0 0.0
    %104 = vmatprep.subr.mxu0 0.0
    %105 = vmatpush1.msra.mxu0 0.0
    %106 = vmatprep.subr.mxu0 0.0
    %107 = vmatpush1.msra.mxu0 0.0
    %108 = vmatprep.subr.mxu0 0.0
    %109 = vmatpush1.msra.mxu0 0.0
    %110 = vmatprep.subr.mxu0 0.0
    %111 = vmatpush1.msra.mxu0 0.0
    %112 = vmatprep.subr.mxu0 0.0
    %113 = vmatpush1.msra.mxu0 0.0
    %114 = vmatprep.subr.mxu0 0.0
    %115 = vmatpush1.msra.mxu0 0.0
    %116 = vmatprep.subr.mxu0 0.0
    %117 = vmatpush1.msra.mxu0 0.0
    %118 = vmatprep.subr.mxu0 0.0
    %119 = vmatpush1.msra.mxu0 0.0
    %120 = vmatprep.subr.mxu0 0.0
    %121 = vmatpush1.msra.mxu0 0.0
    %122 = vmatprep.subr.mxu0 0.0
    %123 = vmatpush1.msra.mxu0 0.0
    %124 = vmatprep.subr.mxu0 0.0
    %125 = vmatpush1.msra.mxu0 0.0
    %126 = vmatprep.subr.mxu0 0.0
    %127 = vmatpush1.msra.mxu0 0.0
    %128 = vmatprep.mubr.f32.mxu0 0.0
    %129 = vmatmul.mubr.f32.gmra.mrb[0].mxu0 %v62
    %v130 = vpop.f32.mrb[0].mxu0
    %v131 = vadd.f32 %v58, %v130
    %v132 = vpop.f32.mrb[0].mxu0
    %133 = vdwg.mxu0
    %v134 = vmax.f32 %v131, 0.0
    %v135 = vld [vmem:[%s3] sm:$0xff]
    %v136 = vld [vmem:[%s3 + $0x8] sm:$0xff]
    %v137 = vld [vmem:[%s3 + $0x10] sm:$0xff]
    %v138 = vld [vmem:[%s3 + $0x18] sm:$0xff]
    %v139 = vld [vmem:[%s9 + $0x2] sm:$0x1]
    %v141 = vlaneseq
    %v142 = vshrl.u32 %v141, 7
    %v143 = vsub.s32 0, %v142
    %v144 = vrot.slane %v139, %v143
    %vm146 = vcmask 261120
    %v148 = vsel %vm146, %v134, 0
    %150 = vmatprep.subr.mxu0 0.0
    %151 = vmatpush1.msra.mxu0 %v135
    %152 = vmatprep.subr.mxu0 0.0
    %153 = vmatpush1.msra.mxu0 %v136
    %154 = vmatprep.subr.mxu0 0.0
    %155 = vmatpush1.msra.mxu0 %v137
    %156 = vmatprep.subr.mxu0 0.0
    %157 = vmatpush1.msra.mxu0 %v138
    %158 = vmatprep.subr.mxu0 0.0
    %159 = vmatpush1.msra.mxu0 0.0
    %160 = vmatprep.subr.mxu0 0.0
    %161 = vmatpush1.msra.mxu0 0.0
    %162 = vmatprep.subr.mxu0 0.0
    %163 = vmatpush1.msra.mxu0 0.0
    %164 = vmatprep.subr.mxu0 0.0
    %165 = vmatpush1.msra.mxu0 0.0
    %166 = vmatprep.subr.mxu0 0.0
    %167 = vmatpush1.msra.mxu0 0.0
    %168 = vmatprep.subr.mxu0 0.0
    %169 = vmatpush1.msra.mxu0 0.0
    %170 = vmatprep.subr.mxu0 0.0
    %171 = vmatpush1.msra.mxu0 0.0
    %172 = vmatprep.subr.mxu0 0.0
    %173 = vmatpush1.msra.mxu0 0.0
    %174 = vmatprep.subr.mxu0 0.0
    %175 = vmatpush1.msra.mxu0 0.0
    %176 = vmatprep.subr.mxu0 0.0
    %177 = vmatpush1.msra.mxu0 0.0
    %178 = vmatprep.subr.mxu0 0.0
    %179 = vmatpush1.msra.mxu0 0.0
    %180 = vmatprep.subr.mxu0 0.0
    %181 = vmatpush1.msra.mxu0 0.0
    %182 = vmatprep.subr.mxu0 0.0
    %183 = vmatpush1.msra.mxu0 0.0
    %184 = vmatprep.subr.mxu0 0.0
    %185 = vmatpush1.msra.mxu0 0.0
    %186 = vmatprep.subr.mxu0 0.0
    %187 = vmatpush1.msra.mxu0 0.0
    %188 = vmatprep.subr.mxu0 0.0
    %189 = vmatpush1.msra.mxu0 0.0
    %190 = vmatprep.subr.mxu0 0.0
    %191 = vmatpush1.msra.mxu0 0.0
    %192 = vmatprep.subr.mxu0 0.0
    %193 = vmatpush1.msra.mxu0 0.0
    %194 = vmatprep.subr.mxu0 0.0
    %195 = vmatpush1.msra.mxu0 0.0
    %196 = vmatprep.subr.mxu0 0.0
    %197 = vmatpush1.msra.mxu0 0.0
    %198 = vmatprep.subr.mxu0 0.0
    %199 = vmatpush1.msra.mxu0 0.0
    %200 = vmatprep.subr.mxu0 0.0
    %201 = vmatpush1.msra.mxu0 0.0
    %202 = vmatprep.subr.mxu0 0.0
    %203 = vmatpush1.msra.mxu0 0.0
    %204 = vmatprep.subr.mxu0 0.0
    %205 = vmatpush1.msra.mxu0 0.0
    %206 = vmatprep.subr.mxu0 0.0
    %207 = vmatpush1.msra.mxu0 0.0
    %208 = vmatprep.subr.mxu0 0.0
    %209 = vmatpush1.msra.mxu0 0.0
    %210 = vmatprep.subr.mxu0 0.0
    %211 = vmatpush1.msra.mxu0 0.0
    %212 = vmatprep.subr.mxu0 0.0
    %213 = vmatpush1.msra.mxu0 0.0
    %214 = vmatprep.mubr.f32.mxu0 0.0
    %215 = vmatmul.mubr.f32.gmra.mrb[0].mxu0 %v148
    %v216 = vpop.f32.mrb[0].mxu0
    %v217 = vadd.f32 %v144, %v216
    %v218 = vpop.f32.mrb[0].mxu0
    %219 = vdwg.mxu0
    %v220 = vsub.f32 0.0, %v217
    %v221 = vmul.f32 %v220, 1.442695
    %v222 = vpow.pop %v221
    %v223 = vadd.f32 %v222, 1.0
    %v224 = vrcp.pop %v223
    %v225 = vld [vmem:[%s1] sm:$0xff]
    %v226 = vld [vmem:[%s4] sm:$0xff]
    %v227 = vld [vmem:[%s4 + $0x8] sm:$0xff]
    %v228 = vld [vmem:[%s4 + $0x10] sm:$0xff]
    %v229 = vld [vmem:[%s4 + $0x18] sm:$0xff]
    %v230 = vld [vmem:[%s9 + $0x1] sm:$0x1]
    %v232 = vlaneseq
    %v233 = vshrl.u32 %v232, 7
    %v234 = vsub.s32 0, %v233
    %v235 = vrot.slane %v230, %v234
    %v238 = vsel %vm146, %v225, 0
    %240 = vmatprep.subr.mxu0 0.0
    %241 = vmatpush1.msra.mxu0 %v226
    %242 = vmatprep.subr.mxu0 0.0
    %243 = vmatpush1.msra.mxu0 %v227
    %244 = vmatprep.subr.mxu0 0.0
    %245 = vmatpush1.msra.mxu0 %v228
    %246 = vmatprep.subr.mxu0 0.0
    %247 = vmatpush1.msra.mxu0 %v229
    %248 = vmatprep.subr.mxu0 0.0
    %249 = vmatpush1.msra.mxu0 0.0
    %250 = vmatprep.subr.mxu0 0.0
    %251 = vmatpush1.msra.mxu0 0.0
    %252 = vmatprep.subr.mxu0 0.0
    %253 = vmatpush1.msra.mxu0 0.0
    %254 = vmatprep.subr.mxu0 0.0
    %255 = vmatpush1.msra.mxu0 0.0
    %256 = vmatprep.subr.mxu0 0.0
    %257 = vmatpush1.msra.mxu0 0.0
    %258 = vmatprep.subr.mxu0 0.0
    %259 = vmatpush1.msra.mxu0 0.0
    %260 = vmatprep.subr.mxu0 0.0
    %261 = vmatpush1.msra.mxu0 0.0
    %262 = vmatprep.subr.mxu0 0.0
    %263 = vmatpush1.msra.mxu0 0.0
    %264 = vmatprep.subr.mxu0 0.0
    %265 = vmatpush1.msra.mxu0 0.0
    %266 = vmatprep.subr.mxu0 0.0
    %267 = vmatpush1.msra.mxu0 0.0
    %268 = vmatprep.subr.mxu0 0.0
    %269 = vmatpush1.msra.mxu0 0.0
    %270 = vmatprep.subr.mxu0 0.0
    %271 = vmatpush1.msra.mxu0 0.0
    %272 = vmatprep.subr.mxu0 0.0
    %273 = vmatpush1.msra.mxu0 0.0
    %274 = vmatprep.subr.mxu0 0.0
    %275 = vmatpush1.msra.mxu0 0.0
    %276 = vmatprep.subr.mxu0 0.0
    %277 = vmatpush1.msra.mxu0 0.0
    %278 = vmatprep.subr.mxu0 0.0
    %279 = vmatpush1.msra.mxu0 0.0
    %280 = vmatprep.subr.mxu0 0.0
    %281 = vmatpush1.msra.mxu0 0.0
    %282 = vmatprep.subr.mxu0 0.0
    %283 = vmatpush1.msra.mxu0 0.0
    %284 = vmatprep.subr.mxu0 0.0
    %285 = vmatpush1.msra.mxu0 0.0
    %286 = vmatprep.subr.mxu0 0.0
    %287 = vmatpush1.msra.mxu0 0.0
    %288 = vmatprep.subr.mxu0 0.0
    %289 = vmatpush1.msra.mxu0 0.0
    %290 = vmatprep.subr.mxu0 0.0
    %291 = vmatpush1.msra.mxu0 0.0
    %292 = vmatprep.subr.mxu0 0.0
    %293 = vmatpush1.msra.mxu0 0.0
    %294 = vmatprep.subr.mxu0 0.0
    %295 = vmatpush1.msra.mxu0 0.0
    %296 = vmatprep.subr.mxu0 0.0
    %297 = vmatpush1.msra.mxu0 0.0
    %298 = vmatprep.subr.mxu0 0.0
    %299 = vmatpush1.msra.mxu0 0.0
    %300 = vmatprep.subr.mxu0 0.0
    %301 = vmatpush1.msra.mxu0 0.0
    %302 = vmatprep.subr.mxu0 0.0
    %303 = vmatpush1.msra.mxu0 0.0
    %304 = vmatprep.mubr.f32.mxu0 0.0
    %305 = vmatmul.mubr.f32.gmra.mrb[0].mxu0 %v238
    %v306 = vpop.f32.mrb[0].mxu0
    %v307 = vadd.f32 %v235, %v306
    %v308 = vpop.f32.mrb[0].mxu0
    %309 = vdwg.mxu0
    %v310 = vmax.f32 %v307, 0.0
    %v311 = vld [vmem:[%s5] sm:$0xff]
    %v312 = vld [vmem:[%s5 + $0x8] sm:$0xff]
    %v313 = vld [vmem:[%s5 + $0x10] sm:$0xff]
    %v314 = vld [vmem:[%s5 + $0x18] sm:$0xff]
    %v315 = vld [vmem:[%s5 + $0x20] sm:$0xff]
    %v316 = vld [vmem:[%s5 + $0x28] sm:$0xff]
    %v317 = vld [vmem:[%s5 + $0x30] sm:$0xff]
    %v318 = vld [vmem:[%s5 + $0x38] sm:$0xff]
    %v319 = vld [vmem:[%s9 + $0x3] sm:$0x1]
    %v321 = vlaneseq
    %v322 = vshrl.u32 %v321, 7
    %v323 = vsub.s32 0, %v322
    %v324 = vrot.slane %v319, %v323
    %vm326 = vcmask 523264
    %v328 = vsel %vm326, %v310, 0
    %330 = vmatprep.subr.mxu0 0.0
    %331 = vmatpush1.msra.mxu0 %v311
    %332 = vmatprep.subr.mxu0 0.0
    %333 = vmatpush1.msra.mxu0 %v312
    %334 = vmatprep.subr.mxu0 0.0
    %335 = vmatpush1.msra.mxu0 %v313
    %336 = vmatprep.subr.mxu0 0.0
    %337 = vmatpush1.msra.mxu0 %v314
    %338 = vmatprep.subr.mxu0 0.0
    %339 = vmatpush1.msra.mxu0 %v315
    %340 = vmatprep.subr.mxu0 0.0
    %341 = vmatpush1.msra.mxu0 %v316
    %342 = vmatprep.subr.mxu0 0.0
    %343 = vmatpush1.msra.mxu0 %v317
    %344 = vmatprep.subr.mxu0 0.0
    %345 = vmatpush1.msra.mxu0 %v318
    %346 = vmatprep.subr.mxu0 0.0
    %347 = vmatpush1.msra.mxu0 0.0
    %348 = vmatprep.subr.mxu0 0.0
    %349 = vmatpush1.msra.mxu0 0.0
    %350 = vmatprep.subr.mxu0 0.0
    %351 = vmatpush1.msra.mxu0 0.0
    %352 = vmatprep.subr.mxu0 0.0
    %353 = vmatpush1.msra.mxu0 0.0
    %354 = vmatprep.subr.mxu0 0.0
    %355 = vmatpush1.msra.mxu0 0.0
    %356 = vmatprep.subr.mxu0 0.0
    %357 = vmatpush1.msra.mxu0 0.0
    %358 = vmatprep.subr.mxu0 0.0
    %359 = vmatpush1.msra.mxu0 0.0
    %360 = vmatprep.subr.mxu0 0.0
    %361 = vmatpush1.msra.mxu0 0.0
    %362 = vmatprep.subr.mxu0 0.0
    %363 = vmatpush1.msra.mxu0 0.0
    %364 = vmatprep.subr.mxu0 0.0
    %365 = vmatpush1.msra.mxu0 0.0
    %366 = vmatprep.subr.mxu0 0.0
    %367 = vmatpush1.msra.mxu0 0.0
    %368 = vmatprep.subr.mxu0 0.0
    %369 = vmatpush1.msra.mxu0 0.0
    %370 = vmatprep.subr.mxu0 0.0
    %371 = vmatpush1.msra.mxu0 0.0
    %372 = vmatprep.subr.mxu0 0.0
    %373 = vmatpush1.msra.mxu0 0.0
    %374 = vmatprep.subr.mxu0 0.0
    %375 = vmatpush1.msra.mxu0 0.0
    %376 = vmatprep.subr.mxu0 0.0
    %377 = vmatpush1.msra.mxu0 0.0
    %378 = vmatprep.subr.mxu0 0.0
    %379 = vmatpush1.msra.mxu0 0.0
    %380 = vmatprep.subr.mxu0 0.0
    %381 = vmatpush1.msra.mxu0 0.0
    %382 = vmatprep.subr.mxu0 0.0
    %383 = vmatpush1.msra.mxu0 0.0
    %384 = vmatprep.subr.mxu0 0.0
    %385 = vmatpush1.msra.mxu0 0.0
    %386 = vmatprep.subr.mxu0 0.0
    %387 = vmatpush1.msra.mxu0 0.0
    %388 = vmatprep.subr.mxu0 0.0
    %389 = vmatpush1.msra.mxu0 0.0
    %390 = vmatprep.subr.mxu0 0.0
    %391 = vmatpush1.msra.mxu0 0.0
    %392 = vmatprep.subr.mxu0 0.0
    %393 = vmatpush1.msra.mxu0 0.0
    %394 = vmatprep.mubr.f32.mxu0 0.0
    %395 = vmatmul.mubr.f32.gmra.mrb[0].mxu0 %v328
    %v396 = vpop.f32.mrb[0].mxu0
    %v397 = vadd.f32 %v324, %v396
    %v398 = vpop.f32.mrb[0].mxu0
    %399 = vdwg.mxu0
    %v400 = vsub.f32 0.0, %v397
    %v401 = vmul.f32 %v400, 1.442695
    %v402 = vpow.pop %v401
    %v403 = vadd.f32 %v402, 1.0
    %v404 = vrcp.pop %v403
    %406 = vrot.lane.b32.xlu0 %v404, 112
    %v407 = vpop.permute.xlu0 %406
    %v409 = vsub.f32 %v224, %v407
    %v410 = vmul.f32 %v404, %v409
    %v411 = vpack.c.bf16 %v410, %v410
    %v412 = vld [vmem:[%s6] sm:$0xff]
    %v413 = vld [vmem:[%s6 + $0x8] sm:$0xff]
    %v414 = vld [vmem:[%s6 + $0x10] sm:$0xff]
    %v415 = vld [vmem:[%s6 + $0x18] sm:$0xff]
    %v416 = vld [vmem:[%s9 + $0x4] sm:$0xf]
    %v418 = vlaneseq
    %v419 = vshrl.u32 %v418, 7
    %v420 = vsub.s32 0, %v419
    %v421 = vrot.slane %v416, %v420
    %v422 = vlaneseq
    %v423 = vshrl.u32 %v422, 7
    %v424 = vsub.s32 1, %v423
    %v425 = vrot.slane %v416, %v424
    %v426 = vlaneseq
    %v427 = vshrl.u32 %v426, 7
    %v428 = vsub.s32 2, %v427
    %v429 = vrot.slane %v416, %v428
    %v430 = vlaneseq
    %v431 = vshrl.u32 %v430, 7
    %v432 = vsub.s32 3, %v431
    %v433 = vrot.slane %v416, %v432
    %v442 = vunpack.c.l.b16 %v412
    %v443 = vunpack.c.h.b16 %v412
    %v444 = vunpack.c.l.b16 %v413
    %v445 = vunpack.c.h.b16 %v413
    %v446 = vunpack.c.l.b16 %v414
    %v447 = vunpack.c.h.b16 %v414
    %v448 = vunpack.c.l.b16 %v415
    %v449 = vunpack.c.h.b16 %v415
    %v450 = vpack.c.b16 %v446, %v442
    %v451 = vpack.c.b16 %v447, %v443
    %v452 = vpack.c.b16 %v448, %v444
    %v453 = vpack.c.b16 %v449, %v445
    %v459 = vsel %vm60, %v411, 0
    %461 = vmatprep.subr.bf16.mxu0 %v451
    %462 = vmatpush1.bf16.msra.mxu0 %v450
    %463 = vmatprep.subr.bf16.mxu0 0
    %464 = vmatpush1.bf16.msra.mxu0 0
    %465 = vmatprep.subr.bf16.mxu0 0
    %466 = vmatpush1.bf16.msra.mxu0 0
    %467 = vmatprep.subr.bf16.mxu0 0
    %468 = vmatpush1.bf16.msra.mxu0 0
    %469 = vmatprep.subr.bf16.mxu0 0
    %470 = vmatpush1.bf16.msra.mxu0 0
    %471 = vmatprep.subr.bf16.mxu0 0
    %472 = vmatpush1.bf16.msra.mxu0 0
    %473 = vmatprep.subr.bf16.mxu0 0
    %474 = vmatpush1.bf16.msra.mxu0 0
    %475 = vmatprep.subr.bf16.mxu0 0
    %476 = vmatpush1.bf16.msra.mxu0 0
    %477 = vmatprep.subr.bf16.mxu0 0
    %478 = vmatpush1.bf16.msra.mxu0 0
    %479 = vmatprep.subr.bf16.mxu0 0
    %480 = vmatpush1.bf16.msra.mxu0 0
    %481 = vmatprep.subr.bf16.mxu0 0
    %482 = vmatpush1.bf16.msra.mxu0 0
    %483 = vmatprep.subr.bf16.mxu0 0
    %484 = vmatpush1.bf16.msra.mxu0 0
    %485 = vmatprep.subr.bf16.mxu0 0
    %486 = vmatpush1.bf16.msra.mxu0 0
    %487 = vmatprep.subr.bf16.mxu0 0
    %488 = vmatpush1.bf16.msra.mxu0 0
    %489 = vmatprep.subr.bf16.mxu0 0
    %490 = vmatpush1.bf16.msra.mxu0 0
    %491 = vmatprep.subr.bf16.mxu0 0
    %492 = vmatpush1.bf16.msra.mxu0 0
    %493 = vmatprep.mubr.bf16.mxu0 0
    %494 = vmatmul.mubr.bf16.gmra.mrb[0].mxu0 %v459
    %v495 = vpop.f32.mrb[0].mxu0
    %v496 = vadd.f32 %v421, %v495
    %v497 = vpop.f32.mrb[0].mxu0
    %v498 = vadd.f32 %v425, %v497
    %v499 = vpop.f32.mrb[0].mxu0
    %v500 = vpop.f32.mrb[0].mxu0
    %501 = vdwg.mxu0
    %502 = vmatprep.subr.bf16.mxu0 %v453
    %503 = vmatpush1.bf16.msra.mxu0 %v452
    %504 = vmatprep.subr.bf16.mxu0 0
    %505 = vmatpush1.bf16.msra.mxu0 0
    %506 = vmatprep.subr.bf16.mxu0 0
    %507 = vmatpush1.bf16.msra.mxu0 0
    %508 = vmatprep.subr.bf16.mxu0 0
    %509 = vmatpush1.bf16.msra.mxu0 0
    %510 = vmatprep.subr.bf16.mxu0 0
    %511 = vmatpush1.bf16.msra.mxu0 0
    %512 = vmatprep.subr.bf16.mxu0 0
    %513 = vmatpush1.bf16.msra.mxu0 0
    %514 = vmatprep.subr.bf16.mxu0 0
    %515 = vmatpush1.bf16.msra.mxu0 0
    %516 = vmatprep.subr.bf16.mxu0 0
    %517 = vmatpush1.bf16.msra.mxu0 0
    %518 = vmatprep.subr.bf16.mxu0 0
    %519 = vmatpush1.bf16.msra.mxu0 0
    %520 = vmatprep.subr.bf16.mxu0 0
    %521 = vmatpush1.bf16.msra.mxu0 0
    %522 = vmatprep.subr.bf16.mxu0 0
    %523 = vmatpush1.bf16.msra.mxu0 0
    %524 = vmatprep.subr.bf16.mxu0 0
    %525 = vmatpush1.bf16.msra.mxu0 0
    %526 = vmatprep.subr.bf16.mxu0 0
    %527 = vmatpush1.bf16.msra.mxu0 0
    %528 = vmatprep.subr.bf16.mxu0 0
    %529 = vmatpush1.bf16.msra.mxu0 0
    %530 = vmatprep.subr.bf16.mxu0 0
    %531 = vmatpush1.bf16.msra.mxu0 0
    %532 = vmatprep.subr.bf16.mxu0 0
    %533 = vmatpush1.bf16.msra.mxu0 0
    %534 = vmatprep.mubr.bf16.mxu0 0
    %535 = vmatmul.mubr.bf16.gmra.mrb[0].mxu0 %v459
    %v536 = vpop.f32.mrb[0].mxu0
    %v537 = vadd.f32 %v429, %v536
    %v538 = vpop.f32.mrb[0].mxu0
    %v539 = vadd.f32 %v433, %v538
    %v540 = vpop.f32.mrb[0].mxu0
    %v541 = vpop.f32.mrb[0].mxu0
    %542 = vdwg.mxu0
    %v543 = vsub.f32 0.0, %v496
    %v544 = vsub.f32 0.0, %v498
    %v545 = vsub.f32 0.0, %v537
    %v546 = vsub.f32 0.0, %v539
    %v547 = vmul.f32 %v543, 1.442695
    %v548 = vpow.pop %v547
    %v549 = vmul.f32 %v544, 1.442695
    %v550 = vpow.pop %v549
    %v551 = vmul.f32 %v545, 1.442695
    %v552 = vpow.pop %v551
    %v553 = vmul.f32 %v546, 1.442695
    %v554 = vpow.pop %v553
    %v555 = vadd.f32 %v548, 1.0
    %v556 = vadd.f32 %v550, 1.0
    %v557 = vadd.f32 %v552, 1.0
    %v558 = vadd.f32 %v554, 1.0
    %v559 = vrcp.pop %v555
    %v560 = vrcp.pop %v556
    %v561 = vrcp.pop %v557
    %v562 = vrcp.pop %v558
    %v563 = vpack.c.bf16 %v559, %v559
    %v564 = vpack.c.bf16 %v560, %v560
    %v565 = vpack.c.bf16 %v561, %v561
    %v566 = vpack.c.bf16 %v562, %v562
    %v567 = vld [vmem:[#allocation2] sm:$0xff]
    %v568 = vld [vmem:[#allocation2 + $0x8] sm:$0xff]
    %v569 = vld [vmem:[#allocation2 + $0x10] sm:$0xff]
    %v570 = vld [vmem:[#allocation2 + $0x18] sm:$0xff]
    %v571 = vld [vmem:[#allocation2 + $0x20] sm:$0xff]
    %v572 = vld [vmem:[#allocation2 + $0x28] sm:$0xff]
    %v573 = vld [vmem:[#allocation2 + $0x30] sm:$0xff]
    %v574 = vld [vmem:[#allocation2 + $0x38] sm:$0xff]
    %v575 = vld [vmem:[#allocation2 + $0x40] sm:$0xff]
    %v576 = vld [vmem:[#allocation2 + $0x48] sm:$0xff]
    %v577 = vld [vmem:[#allocation2 + $0x50] sm:$0xff]
    %v578 = vld [vmem:[#allocation2 + $0x58] sm:$0xff]
    %v579 = vld [vmem:[#allocation2 + $0x60] sm:$0xff]
    %v580 = vld [vmem:[#allocation2 + $0x68] sm:$0xff]
    %v581 = vld [vmem:[#allocation2 + $0x70] sm:$0xff]
    %v582 = vld [vmem:[#allocation2 + $0x78] sm:$0xff]
    %v583 = vld [vmem:[#allocation2 + $0x80] sm:$0xff]
    %v584 = vld [vmem:[#allocation2 + $0x88] sm:$0xff]
    %v585 = vld [vmem:[#allocation2 + $0x90] sm:$0xff]
    %v586 = vld [vmem:[#allocation2 + $0x98] sm:$0xff]
    %v587 = vld [vmem:[#allocation2 + $0xa0] sm:$0xff]
    %v588 = vld [vmem:[#allocation2 + $0xa8] sm:$0xff]
    %v589 = vld [vmem:[#allocation2 + $0xb0] sm:$0xff]
    %v590 = vld [vmem:[#allocation2 + $0xb8] sm:$0xff]
    %v591 = vld [vmem:[#allocation2 + $0xc0] sm:$0xff]
    %v592 = vld [vmem:[#allocation2 + $0xc8] sm:$0xff]
    %v593 = vld [vmem:[#allocation2 + $0xd0] sm:$0xff]
    %v594 = vld [vmem:[#allocation2 + $0xd8] sm:$0xff]
    %v595 = vld [vmem:[#allocation2 + $0xe0] sm:$0xff]
    %v596 = vld [vmem:[#allocation2 + $0xe8] sm:$0xff]
    %v597 = vld [vmem:[#allocation2 + $0xf0] sm:$0xff]
    %v598 = vld [vmem:[#allocation2 + $0xf8] sm:$0xff]
    %v599 = vld [vmem:[#allocation2 + $0x100] sm:$0xff]
    %v600 = vld [vmem:[#allocation2 + $0x108] sm:$0xff]
    %v601 = vld [vmem:[#allocation2 + $0x110] sm:$0xff]
    %v602 = vld [vmem:[#allocation2 + $0x118] sm:$0xff]
    %v603 = vld [vmem:[#allocation2 + $0x120] sm:$0xff]
    %v604 = vld [vmem:[#allocation2 + $0x128] sm:$0xff]
    %v605 = vld [vmem:[#allocation2 + $0x130] sm:$0xff]
    %v606 = vld [vmem:[#allocation2 + $0x138] sm:$0xff]
    %v607 = vld [vmem:[#allocation2 + $0x140] sm:$0xff]
    %v608 = vld [vmem:[#allocation2 + $0x148] sm:$0xff]
    %v609 = vld [vmem:[#allocation2 + $0x150] sm:$0xff]
    %v610 = vld [vmem:[#allocation2 + $0x158] sm:$0xff]
    %v611 = vld [vmem:[#allocation2 + $0x160] sm:$0xff]
    %v612 = vld [vmem:[#allocation2 + $0x168] sm:$0xff]
    %v613 = vld [vmem:[#allocation2 + $0x170] sm:$0xff]
    %v614 = vld [vmem:[#allocation2 + $0x178] sm:$0xff]
    %v615 = vld [vmem:[#allocation2 + $0x180] sm:$0xff]
    %v616 = vld [vmem:[#allocation2 + $0x188] sm:$0xff]
    %v617 = vld [vmem:[#allocation2 + $0x190] sm:$0xff]
    %v618 = vld [vmem:[#allocation2 + $0x198] sm:$0xff]
    %v619 = vld [vmem:[#allocation2 + $0x1a0] sm:$0xff]
    %v620 = vld [vmem:[#allocation2 + $0x1a8] sm:$0xff]
    %v621 = vld [vmem:[#allocation2 + $0x1b0] sm:$0xff]
    %v622 = vld [vmem:[#allocation2 + $0x1b8] sm:$0xff]
    %v623 = vld [vmem:[#allocation2 + $0x1c0] sm:$0xff]
    %v624 = vld [vmem:[#allocation2 + $0x1c8] sm:$0xff]
    %v625 = vld [vmem:[#allocation2 + $0x1d0] sm:$0xff]
    %v626 = vld [vmem:[#allocation2 + $0x1d8] sm:$0xff]
    %v627 = vld [vmem:[#allocation2 + $0x1e0] sm:$0xff]
    %v628 = vld [vmem:[#allocation2 + $0x1e8] sm:$0xff]
    %v629 = vld [vmem:[#allocation2 + $0x1f0] sm:$0xff]
    %v630 = vld [vmem:[#allocation2 + $0x1f8] sm:$0xff]
    %v631 = vld [vmem:[%s9 + $0x8] sm:$0x3]
    %v633 = vlaneseq
    %v634 = vshrl.u32 %v633, 7
    %v635 = vsub.s32 0, %v634
    %v636 = vrot.slane %v631, %v635
    %v637 = vlaneseq
    %v638 = vshrl.u32 %v637, 7
    %v639 = vsub.s32 1, %v638
    %v640 = vrot.slane %v631, %v639
    %v707 = vunpack.c.l.b16 %v567
    %v708 = vunpack.c.h.b16 %v567
    %v709 = vunpack.c.l.b16 %v568
    %v710 = vunpack.c.h.b16 %v568
    %v711 = vunpack.c.l.b16 %v569
    %v712 = vunpack.c.h.b16 %v569
    %v713 = vunpack.c.l.b16 %v570
    %v714 = vunpack.c.h.b16 %v570
    %v715 = vunpack.c.l.b16 %v571
    %v716 = vunpack.c.h.b16 %v571
    %v717 = vunpack.c.l.b16 %v572
    %v718 = vunpack.c.h.b16 %v572
    %v719 = vunpack.c.l.b16 %v573
    %v720 = vunpack.c.h.b16 %v573
    %v721 = vunpack.c.l.b16 %v574
    %v722 = vunpack.c.h.b16 %v574
    %v723 = vunpack.c.l.b16 %v575
    %v724 = vunpack.c.h.b16 %v575
    %v725 = vunpack.c.l.b16 %v576
    %v726 = vunpack.c.h.b16 %v576
    %v727 = vunpack.c.l.b16 %v577
    %v728 = vunpack.c.h.b16 %v577
    %v729 = vunpack.c.l.b16 %v578
    %v730 = vunpack.c.h.b16 %v578
    %v731 = vunpack.c.l.b16 %v579
    %v732 = vunpack.c.h.b16 %v579
    %v733 = vunpack.c.l.b16 %v580
    %v734 = vunpack.c.h.b16 %v580
    %v735 = vunpack.c.l.b16 %v581
    %v736 = vunpack.c.h.b16 %v581
    %v737 = vunpack.c.l.b16 %v582
    %v738 = vunpack.c.h.b16 %v582
    %v739 = vunpack.c.l.b16 %v583
    %v740 = vunpack.c.h.b16 %v583
    %v741 = vunpack.c.l.b16 %v584
    %v742 = vunpack.c.h.b16 %v584
    %v743 = vunpack.c.l.b16 %v585
    %v744 = vunpack.c.h.b16 %v585
    %v745 = vunpack.c.l.b16 %v586
    %v746 = vunpack.c.h.b16 %v586
    %v747 = vunpack.c.l.b16 %v587
    %v748 = vunpack.c.h.b16 %v587
    %v749 = vunpack.c.l.b16 %v588
    %v750 = vunpack.c.h.b16 %v588
    %v751 = vunpack.c.l.b16 %v589
    %v752 = vunpack.c.h.b16 %v589
    %v753 = vunpack.c.l.b16 %v590
    %v754 = vunpack.c.h.b16 %v590
    %v755 = vunpack.c.l.b16 %v591
    %v756 = vunpack.c.h.b16 %v591
    %v757 = vunpack.c.l.b16 %v592
    %v758 = vunpack.c.h.b16 %v592
    %v759 = vunpack.c.l.b16 %v593
    %v760 = vunpack.c.h.b16 %v593
    %v761 = vunpack.c.l.b16 %v594
    %v762 = vunpack.c.h.b16 %v594
    %v763 = vunpack.c.l.b16 %v595
    %v764 = vunpack.c.h.b16 %v595
    %v765 = vunpack.c.l.b16 %v596
    %v766 = vunpack.c.h.b16 %v596
    %v767 = vunpack.c.l.b16 %v597
    %v768 = vunpack.c.h.b16 %v597
    %v769 = vunpack.c.l.b16 %v598
    %v770 = vunpack.c.h.b16 %v598
    %v771 = vunpack.c.l.b16 %v599
    %v772 = vunpack.c.h.b16 %v599
    %v773 = vunpack.c.l.b16 %v600
    %v774 = vunpack.c.h.b16 %v600
    %v775 = vunpack.c.l.b16 %v601
    %v776 = vunpack.c.h.b16 %v601
    %v777 = vunpack.c.l.b16 %v602
    %v778 = vunpack.c.h.b16 %v602
    %v779 = vunpack.c.l.b16 %v603
    %v780 = vunpack.c.h.b16 %v603
    %v781 = vunpack.c.l.b16 %v604
    %v782 = vunpack.c.h.b16 %v604
    %v783 = vunpack.c.l.b16 %v605
    %v784 = vunpack.c.h.b16 %v605
    %v785 = vunpack.c.l.b16 %v606
    %v786 = vunpack.c.h.b16 %v606
    %v787 = vunpack.c.l.b16 %v607
    %v788 = vunpack.c.h.b16 %v607
    %v789 = vunpack.c.l.b16 %v608
    %v790 = vunpack.c.h.b16 %v608
    %v791 = vunpack.c.l.b16 %v609
    %v792 = vunpack.c.h.b16 %v609
    %v793 = vunpack.c.l.b16 %v610
    %v794 = vunpack.c.h.b16 %v610
    %v795 = vunpack.c.l.b16 %v611
    %v796 = vunpack.c.h.b16 %v611
    %v797 = vunpack.c.l.b16 %v612
    %v798 = vunpack.c.h.b16 %v612
    %v799 = vunpack.c.l.b16 %v613
    %v800 = vunpack.c.h.b16 %v613
    %v801 = vunpack.c.l.b16 %v614
    %v802 = vunpack.c.h.b16 %v614
    %v803 = vunpack.c.l.b16 %v615
    %v804 = vunpack.c.h.b16 %v615
    %v805 = vunpack.c.l.b16 %v616
    %v806 = vunpack.c.h.b16 %v616
    %v807 = vunpack.c.l.b16 %v617
    %v808 = vunpack.c.h.b16 %v617
    %v809 = vunpack.c.l.b16 %v618
    %v810 = vunpack.c.h.b16 %v618
    %v811 = vunpack.c.l.b16 %v619
    %v812 = vunpack.c.h.b16 %v619
    %v813 = vunpack.c.l.b16 %v620
    %v814 = vunpack.c.h.b16 %v620
    %v815 = vunpack.c.l.b16 %v621
    %v816 = vunpack.c.h.b16 %v621
    %v817 = vunpack.c.l.b16 %v622
    %v818 = vunpack.c.h.b16 %v622
    %v819 = vunpack.c.l.b16 %v623
    %v820 = vunpack.c.h.b16 %v623
    %v821 = vunpack.c.l.b16 %v624
    %v822 = vunpack.c.h.b16 %v624
    %v823 = vunpack.c.l.b16 %v625
    %v824 = vunpack.c.h.b16 %v625
    %v825 = vunpack.c.l.b16 %v626
    %v826 = vunpack.c.h.b16 %v626
    %v827 = vunpack.c.l.b16 %v627
    %v828 = vunpack.c.h.b16 %v627
    %v829 = vunpack.c.l.b16 %v628
    %v830 = vunpack.c.h.b16 %v628
    %v831 = vunpack.c.l.b16 %v629
    %v832 = vunpack.c.h.b16 %v629
    %v833 = vunpack.c.l.b16 %v630
    %v834 = vunpack.c.h.b16 %v630
    %v835 = vpack.c.b16 %v709, %v707
    %v836 = vpack.c.b16 %v710, %v708
    %v837 = vpack.c.b16 %v713, %v711
    %v838 = vpack.c.b16 %v714, %v712
    %v839 = vpack.c.b16 %v717, %v715
    %v840 = vpack.c.b16 %v718, %v716
    %v841 = vpack.c.b16 %v721, %v719
    %v842 = vpack.c.b16 %v722, %v720
    %v843 = vpack.c.b16 %v725, %v723
    %v844 = vpack.c.b16 %v726, %v724
    %v845 = vpack.c.b16 %v729, %v727
    %v846 = vpack.c.b16 %v730, %v728
    %v847 = vpack.c.b16 %v733, %v731
    %v848 = vpack.c.b16 %v734, %v732
    %v849 = vpack.c.b16 %v737, %v735
    %v850 = vpack.c.b16 %v738, %v736
    %v851 = vpack.c.b16 %v741, %v739
    %v852 = vpack.c.b16 %v742, %v740
    %v853 = vpack.c.b16 %v745, %v743
    %v854 = vpack.c.b16 %v746, %v744
    %v855 = vpack.c.b16 %v749, %v747
    %v856 = vpack.c.b16 %v750, %v748
    %v857 = vpack.c.b16 %v753, %v751
    %v858 = vpack.c.b16 %v754, %v752
    %v859 = vpack.c.b16 %v757, %v755
    %v860 = vpack.c.b16 %v758, %v756
    %v861 = vpack.c.b16 %v761, %v759
    %v862 = vpack.c.b16 %v762, %v760
    %v863 = vpack.c.b16 %v765, %v763
    %v864 = vpack.c.b16 %v766, %v764
    %v865 = vpack.c.b16 %v769, %v767
    %v866 = vpack.c.b16 %v770, %v768
    %v867 = vpack.c.b16 %v773, %v771
    %v868 = vpack.c.b16 %v774, %v772
    %v869 = vpack.c.b16 %v777, %v775
    %v870 = vpack.c.b16 %v778, %v776
    %v871 = vpack.c.b16 %v781, %v779
    %v872 = vpack.c.b16 %v782, %v780
    %v873 = vpack.c.b16 %v785, %v783
    %v874 = vpack.c.b16 %v786, %v784
    %v875 = vpack.c.b16 %v789, %v787
    %v876 = vpack.c.b16 %v790, %v788
    %v877 = vpack.c.b16 %v793, %v791
    %v878 = vpack.c.b16 %v794, %v792
    %v879 = vpack.c.b16 %v797, %v795
    %v880 = vpack.c.b16 %v798, %v796
    %v881 = vpack.c.b16 %v801, %v799
    %v882 = vpack.c.b16 %v802, %v800
    %v883 = vpack.c.b16 %v805, %v803
    %v884 = vpack.c.b16 %v806, %v804
    %v885 = vpack.c.b16 %v809, %v807
    %v886 = vpack.c.b16 %v810, %v808
    %v887 = vpack.c.b16 %v813, %v811
    %v888 = vpack.c.b16 %v814, %v812
    %v889 = vpack.c.b16 %v817, %v815
    %v890 = vpack.c.b16 %v818, %v816
    %v891 = vpack.c.b16 %v821, %v819
    %v892 = vpack.c.b16 %v822, %v820
    %v893 = vpack.c.b16 %v825, %v823
    %v894 = vpack.c.b16 %v826, %v824
    %v895 = vpack.c.b16 %v829, %v827
    %v896 = vpack.c.b16 %v830, %v828
    %v897 = vpack.c.b16 %v833, %v831
    %v898 = vpack.c.b16 %v834, %v832
    %963 = vmatprep.subr.bf16.mxu0 %v836
    %964 = vmatpush1.bf16.msra.mxu0 %v835
    %965 = vmatprep.subr.bf16.mxu0 %v838
    %966 = vmatpush1.bf16.msra.mxu0 %v837
    %967 = vmatprep.subr.bf16.mxu0 %v840
    %968 = vmatpush1.bf16.msra.mxu0 %v839
    %969 = vmatprep.subr.bf16.mxu0 %v842
    %970 = vmatpush1.bf16.msra.mxu0 %v841
    %971 = vmatprep.subr.bf16.mxu0 %v844
    %972 = vmatpush1.bf16.msra.mxu0 %v843
    %973 = vmatprep.subr.bf16.mxu0 %v846
    %974 = vmatpush1.bf16.msra.mxu0 %v845
    %975 = vmatprep.subr.bf16.mxu0 %v848
    %976 = vmatpush1.bf16.msra.mxu0 %v847
    %977 = vmatprep.subr.bf16.mxu0 %v850
    %978 = vmatpush1.bf16.msra.mxu0 %v849
    %979 = vmatprep.subr.bf16.mxu0 %v852
    %980 = vmatpush1.bf16.msra.mxu0 %v851
    %981 = vmatprep.subr.bf16.mxu0 %v854
    %982 = vmatpush1.bf16.msra.mxu0 %v853
    %983 = vmatprep.subr.bf16.mxu0 %v856
    %984 = vmatpush1.bf16.msra.mxu0 %v855
    %985 = vmatprep.subr.bf16.mxu0 %v858
    %986 = vmatpush1.bf16.msra.mxu0 %v857
    %987 = vmatprep.subr.bf16.mxu0 %v860
    %988 = vmatpush1.bf16.msra.mxu0 %v859
    %989 = vmatprep.subr.bf16.mxu0 %v862
    %990 = vmatpush1.bf16.msra.mxu0 %v861
    %991 = vmatprep.subr.bf16.mxu0 %v864
    %992 = vmatpush1.bf16.msra.mxu0 %v863
    %993 = vmatprep.subr.bf16.mxu0 %v866
    %994 = vmatpush1.bf16.msra.mxu0 %v865
    %995 = vmatprep.mubr.bf16.mxu0 %v564
    %996 = vmatmul.mubr.bf16.gmra.mrb[0].mxu0 %v563
    %v997 = vpop.f32.mrb[0].mxu0
    %v998 = vadd.f32 %v636, %v997
    %v999 = vpop.f32.mrb[0].mxu0
    %v1000 = vadd.f32 %v640, %v999
    %v1001 = vpop.f32.mrb[0].mxu0
    %v1002 = vpop.f32.mrb[0].mxu0
    %1003 = vdwg.mxu0
    %1004 = vmatprep.subr.bf16.mxu0 %v868
    %1005 = vmatpush1.bf16.msra.mxu0 %v867
    %1006 = vmatprep.subr.bf16.mxu0 %v870
    %1007 = vmatpush1.bf16.msra.mxu0 %v869
    %1008 = vmatprep.subr.bf16.mxu0 %v872
    %1009 = vmatpush1.bf16.msra.mxu0 %v871
    %1010 = vmatprep.subr.bf16.mxu0 %v874
    %1011 = vmatpush1.bf16.msra.mxu0 %v873
    %1012 = vmatprep.subr.bf16.mxu0 %v876
    %1013 = vmatpush1.bf16.msra.mxu0 %v875
    %1014 = vmatprep.subr.bf16.mxu0 %v878
    %1015 = vmatpush1.bf16.msra.mxu0 %v877
    %1016 = vmatprep.subr.bf16.mxu0 %v880
    %1017 = vmatpush1.bf16.msra.mxu0 %v879
    %1018 = vmatprep.subr.bf16.mxu0 %v882
    %1019 = vmatpush1.bf16.msra.mxu0 %v881
    %1020 = vmatprep.subr.bf16.mxu0 %v884
    %1021 = vmatpush1.bf16.msra.mxu0 %v883
    %1022 = vmatprep.subr.bf16.mxu0 %v886
    %1023 = vmatpush1.bf16.msra.mxu0 %v885
    %1024 = vmatprep.subr.bf16.mxu0 %v888
    %1025 = vmatpush1.bf16.msra.mxu0 %v887
    %1026 = vmatprep.subr.bf16.mxu0 %v890
    %1027 = vmatpush1.bf16.msra.mxu0 %v889
    %1028 = vmatprep.subr.bf16.mxu0 %v892
    %1029 = vmatpush1.bf16.msra.mxu0 %v891
    %1030 = vmatprep.subr.bf16.mxu0 %v894
    %1031 = vmatpush1.bf16.msra.mxu0 %v893
    %1032 = vmatprep.subr.bf16.mxu0 %v896
    %1033 = vmatpush1.bf16.msra.mxu0 %v895
    %1034 = vmatprep.subr.bf16.mxu0 %v898
    %1035 = vmatpush1.bf16.msra.mxu0 %v897
    %1036 = vmatprep.mubr.bf16.mxu0 %v566
    %1037 = vmatmul.mubr.bf16.gmra.mrb[0].mxu0 %v565
    %v1038 = vpop.f32.mrb[0].mxu0
    %v1039 = vadd.f32 %v998, %v1038
    %v1040 = vpop.f32.mrb[0].mxu0
    %v1041 = vadd.f32 %v1000, %v1040
    %v1042 = vpop.f32.mrb[0].mxu0
    %v1043 = vpop.f32.mrb[0].mxu0
    %1044 = vdwg.mxu0
    %v1045 = vsub.f32 0.0, %v1039
    %v1046 = vsub.f32 0.0, %v1041
    %v1047 = vmul.f32 %v1045, 1.442695
    %v1048 = vpow.pop %v1047
    %v1049 = vmul.f32 %v1046, 1.442695
    %v1050 = vpow.pop %v1049
    %v1051 = vadd.f32 %v1048, 1.0
    %v1052 = vadd.f32 %v1050, 1.0
    %v1053 = vrcp.pop %v1051
    %v1054 = vrcp.pop %v1052
    %v1055 = vpack.c.bf16 %v1053, %v1053
    %v1056 = vpack.c.bf16 %v1054, %v1054
    %v1057 = vld [vmem:[%s8] sm:$0xf]
    %v1058 = vld [vmem:[%s8 + $0x4] sm:$0xf]
    %v1059 = vld [vmem:[%s8 + $0x8] sm:$0xf]
    %v1060 = vld [vmem:[%s8 + $0xc] sm:$0xf]
    %v1061 = vld [vmem:[%s8 + $0x10] sm:$0xf]
    %v1062 = vld [vmem:[%s8 + $0x14] sm:$0xf]
    %v1063 = vld [vmem:[%s8 + $0x18] sm:$0xf]
    %v1064 = vld [vmem:[%s8 + $0x1c] sm:$0xf]
    %v1065 = vld [vmem:[%s8 + $0x20] sm:$0xf]
    %v1066 = vld [vmem:[%s8 + $0x24] sm:$0xf]
    %v1067 = vld [vmem:[%s8 + $0x28] sm:$0xf]
    %v1068 = vld [vmem:[%s8 + $0x2c] sm:$0xf]
    %v1069 = vld [vmem:[%s8 + $0x30] sm:$0xf]
    %v1070 = vld [vmem:[%s8 + $0x34] sm:$0xf]
    %v1071 = vld [vmem:[%s8 + $0x38] sm:$0xf]
    %v1072 = vld [vmem:[%s8 + $0x3c] sm:$0xf]
    %v1073 = vld [vmem:[%s8 + $0x40] sm:$0xf]
    %v1074 = vld [vmem:[%s8 + $0x44] sm:$0xf]
    %v1075 = vld [vmem:[%s8 + $0x48] sm:$0xf]
    %v1076 = vld [vmem:[%s8 + $0x4c] sm:$0xf]
    %v1077 = vld [vmem:[%s8 + $0x50] sm:$0xf]
    %v1078 = vld [vmem:[%s8 + $0x54] sm:$0xf]
    %v1079 = vld [vmem:[%s8 + $0x58] sm:$0xf]
    %v1080 = vld [vmem:[%s8 + $0x5c] sm:$0xf]
    %v1081 = vld [vmem:[%s8 + $0x60] sm:$0xf]
    %v1082 = vld [vmem:[%s8 + $0x64] sm:$0xf]
    %v1083 = vld [vmem:[%s8 + $0x68] sm:$0xf]
    %v1084 = vld [vmem:[%s8 + $0x6c] sm:$0xf]
    %v1085 = vld [vmem:[%s8 + $0x70] sm:$0xf]
    %v1086 = vld [vmem:[%s8 + $0x74] sm:$0xf]
    %v1087 = vld [vmem:[%s8 + $0x78] sm:$0xf]
    %v1088 = vld [vmem:[%s8 + $0x7c] sm:$0xf]
    %v1089 = vld [vmem:[%s9 + $0xa] sm:$0x1]
    %v1091 = vlaneseq
    %v1092 = vshrl.u32 %v1091, 7
    %v1093 = vsub.s32 0, %v1092
    %v1094 = vrot.slane %v1089, %v1093
    %v1128 = vunpack.c.l.b16 %v1057
    %v1129 = vunpack.c.l.b16 %v1058
    %v1130 = vunpack.c.l.b16 %v1059
    %v1131 = vunpack.c.l.b16 %v1060
    %v1132 = vunpack.c.l.b16 %v1061
    %v1133 = vunpack.c.l.b16 %v1062
    %v1134 = vunpack.c.l.b16 %v1063
    %v1135 = vunpack.c.l.b16 %v1064
    %v1136 = vunpack.c.l.b16 %v1065
    %v1137 = vunpack.c.l.b16 %v1066
    %v1138 = vunpack.c.l.b16 %v1067
    %v1139 = vunpack.c.l.b16 %v1068
    %v1140 = vunpack.c.l.b16 %v1069
    %v1141 = vunpack.c.l.b16 %v1070
    %v1142 = vunpack.c.l.b16 %v1071
    %v1143 = vunpack.c.l.b16 %v1072
    %v1144 = vunpack.c.l.b16 %v1073
    %v1145 = vunpack.c.l.b16 %v1074
    %v1146 = vunpack.c.l.b16 %v1075
    %v1147 = vunpack.c.l.b16 %v1076
    %v1148 = vunpack.c.l.b16 %v1077
    %v1149 = vunpack.c.l.b16 %v1078
    %v1150 = vunpack.c.l.b16 %v1079
    %v1151 = vunpack.c.l.b16 %v1080
    %v1152 = vunpack.c.l.b16 %v1081
    %v1153 = vunpack.c.l.b16 %v1082
    %v1154 = vunpack.c.l.b16 %v1083
    %v1155 = vunpack.c.l.b16 %v1084
    %v1156 = vunpack.c.l.b16 %v1085
    %v1157 = vunpack.c.l.b16 %v1086
    %v1158 = vunpack.c.l.b16 %v1087
    %v1159 = vunpack.c.l.b16 %v1088
    %v1160 = vpack.c.b16 %v1129, %v1128
    %v1161 = vpack.c.b16 %v1131, %v1130
    %v1162 = vpack.c.b16 %v1133, %v1132
    %v1163 = vpack.c.b16 %v1135, %v1134
    %v1164 = vpack.c.b16 %v1137, %v1136
    %v1165 = vpack.c.b16 %v1139, %v1138
    %v1166 = vpack.c.b16 %v1141, %v1140
    %v1167 = vpack.c.b16 %v1143, %v1142
    %v1168 = vpack.c.b16 %v1145, %v1144
    %v1169 = vpack.c.b16 %v1147, %v1146
    %v1170 = vpack.c.b16 %v1149, %v1148
    %v1171 = vpack.c.b16 %v1151, %v1150
    %v1172 = vpack.c.b16 %v1153, %v1152
    %v1173 = vpack.c.b16 %v1155, %v1154
    %v1174 = vpack.c.b16 %v1157, %v1156
    %v1175 = vpack.c.b16 %v1159, %v1158
    %1192 = vmatprep.subr.bf16.mxu0 0
    %1193 = vmatpush1.bf16.msra.mxu0 %v1160
    %1194 = vmatprep.subr.bf16.mxu0 0
    %1195 = vmatpush1.bf16.msra.mxu0 %v1161
    %1196 = vmatprep.subr.bf16.mxu0 0
    %1197 = vmatpush1.bf16.msra.mxu0 %v1162
    %1198 = vmatprep.subr.bf16.mxu0 0
    %1199 = vmatpush1.bf16.msra.mxu0 %v1163
    %1200 = vmatprep.subr.bf16.mxu0 0
    %1201 = vmatpush1.bf16.msra.mxu0 %v1164
    %1202 = vmatprep.subr.bf16.mxu0 0
    %1203 = vmatpush1.bf16.msra.mxu0 %v1165
    %1204 = vmatprep.subr.bf16.mxu0 0
    %1205 = vmatpush1.bf16.msra.mxu0 %v1166
    %1206 = vmatprep.subr.bf16.mxu0 0
    %1207 = vmatpush1.bf16.msra.mxu0 %v1167
    %1208 = vmatprep.subr.bf16.mxu0 0
    %1209 = vmatpush1.bf16.msra.mxu0 %v1168
    %1210 = vmatprep.subr.bf16.mxu0 0
    %1211 = vmatpush1.bf16.msra.mxu0 %v1169
    %1212 = vmatprep.subr.bf16.mxu0 0
    %1213 = vmatpush1.bf16.msra.mxu0 %v1170
    %1214 = vmatprep.subr.bf16.mxu0 0
    %1215 = vmatpush1.bf16.msra.mxu0 %v1171
    %1216 = vmatprep.subr.bf16.mxu0 0
    %1217 = vmatpush1.bf16.msra.mxu0 %v1172
    %1218 = vmatprep.subr.bf16.mxu0 0
    %1219 = vmatpush1.bf16.msra.mxu0 %v1173
    %1220 = vmatprep.subr.bf16.mxu0 0
    %1221 = vmatpush1.bf16.msra.mxu0 %v1174
    %1222 = vmatprep.subr.bf16.mxu0 0
    %1223 = vmatpush1.bf16.msra.mxu0 %v1175
    %1224 = vmatprep.mubr.bf16.mxu0 %v1056
    %1225 = vmatmul.mubr.bf16.gmra.mrb[0].mxu0 %v1055
    %v1226 = vpop.f32.mrb[0].mxu0
    %v1227 = vadd.f32 %v1094, %v1226
    %v1228 = vpop.f32.mrb[0].mxu0
    %v1229 = vpop.f32.mrb[0].mxu0
    %v1230 = vpop.f32.mrb[0].mxu0
    %1231 = vdwg.mxu0
    %v1232 = vsub.f32 0.0, %v1227
    %v1233 = vmul.f32 %v1232, 1.442695
    %v1234 = vpow.pop %v1233
    %v1235 = vadd.f32 %v1234, 1.0
    %v1236 = vrcp.pop %v1235
    %v1237 = vmul.f32 1.0, %v1236
    %vm1238 = vcmask 7168
    %1239 = vst.msk [vmem:[%s10] sm:$0xff] %vm1238, %v1237
    // Predicated region
    $region46: #{tpu_custom_call.1} parent=1 // pred_check
      _
    $region47: #{tpu_custom_call.1} parent=1 // pred_check_branch
      %1241 = sbr.rel (0) target = $region49
    $region48: #{tpu_custom_call.1} parent=1 // pred_region
      _
    $region49: #{tpu_custom_call.1} parent=1 // pred_fallthru
      _
    // Predicated region
    $region50: #{tpu_custom_call.1} parent=1 // pred_check
      _
    $region51: #{tpu_custom_call.1} parent=1 // pred_check_branch
      %1243 = sbr.rel (0) target = $region53
    $region52: #{tpu_custom_call.1} parent=1 // pred_region
      _
    $region53: #{tpu_custom_call.1} parent=1 // pred_fallthru
      _
    %1244 = vsyncpa [#allocation3], 1

</llo_original>
